<compile_context>
chip_gen: v7x
topology: tpu7x:2x2x1
jax: 0.10.0
libtpu: 0.0.40
codegen_flags: <defaults>
</compile_context>

<pallas_src>
import functools

import numpy as np
import jax
import jax.numpy as jnp
from jax.experimental import pallas as pl
from jax.experimental.pallas import tpu as pltpu


# ----------------------------- Pallas kernels --------------------------------

def _scale_bias_kernel(x_ref, s_ref, b_ref, o_ref):
    # x_ref: (1, tc, tl) activation tile; s_ref/b_ref: (tc, 1) f32 per-channel
    # params, broadcast along lanes on the VPU.
    o_ref[...] = (x_ref[...] * s_ref[...] + b_ref[...]).astype(o_ref.dtype)


def _scale_only_kernel(x_ref, s_ref, o_ref):
    o_ref[...] = (x_ref[...] * s_ref[...]).astype(o_ref.dtype)


# ------------------------------ tile selection --------------------------------

def _pick_tiles(C, L, itemsize, target_bytes=2 << 20):
    """Channel (sublane) / spatial (lane) tile sizes for ~target_bytes blocks.

    Guarantees a legal block: tc is a multiple of the sublane pack or == C,
    tl is a multiple of 128 or == L.  Partial (tail) blocks are masked by the
    cdiv grid, never by shrinking the block below the pack size.
    """
    pack = max(8, 32 // itemsize)                  # 8 f32, 16 bf16, 32 int8/fp8
    target_elems = max(128, target_bytes // itemsize)

    tl = L if L <= target_elems else max(128, (target_elems // 128) * 128)

    max_tc = max(1, target_elems // tl)
    if C <= max_tc or C <= pack:
        tc = C                                     # full dim -> always legal
    else:
        tc = max(pack, (min(max_tc, C) // pack) * pack)
    return tc, tl, pack


def _ensure_multi_step(B, C, L, tc, tl, itemsize, pack):
    """v7x has 2 TensorCores: keep >=2 grid steps for non-trivial workloads."""
    steps = B * pl.cdiv(C, tc) * pl.cdiv(L, tl)
    if steps > 1 or B * C * L * itemsize <= (512 << 10):
        return tc, tl
    if L >= 256:
        tl = max(128, ((L // 2) // 128) * 128)
    elif C >= 2 * pack:
        tc = max(pack, ((C // 2) // pack) * pack)
    return tc, tl


# ------------------------------- forward pass --------------------------------

@functools.partial(jax.jit, static_argnames=("donate_x",))
def layer_scale(x, weight, bias=None, *, donate_x=False):
    """LayerScale forward (depthwise 1x1 conv == per-channel scale + bias).

    x:      (B, C, H, W)
    weight: (C, 1, 1, 1) or (C,)
    bias:   (C,) or None
    donate_x: alias the output onto x's HBM buffer (caller must donate x).
    """
    B, C, H, W = x.shape
    L = H * W
    itemsize = jnp.dtype(x.dtype).itemsize

    # Keep params in f32: LayerScale scales are ~1e-5; bf16 params lose accuracy.
    w = weight.reshape(C, 1).astype(jnp.float32)
    b = None if bias is None else bias.reshape(C, 1).astype(jnp.float32)

    x3 = x.reshape(B, C, L)          # contiguous: channels->sublanes, HW->lanes

    tc, tl, pack = _pick_tiles(C, L, itemsize)
    tc, tl = _ensure_multi_step(B, C, L, tc, tl, itemsize, pack)
    grid = (B, pl.cdiv(C, tc), pl.cdiv(L, tl))

    x_spec = pl.BlockSpec((1, tc, tl), lambda bi, ci, li: (bi, ci, li))
    # Per-channel params: block index ignores (batch, lane) grid axes, so the
    # (tc,1) block is only re-DMA'd when the channel tile changes.
    p_spec = pl.BlockSpec((tc, 1), lambda bi, ci, li: (ci, 0))

    if b is None:
        kernel, operands, in_specs, n_params = (
            _scale_only_kernel, (x3, w), [x_spec, p_spec], 1)
    else:
        kernel, operands, in_specs, n_params = (
            _scale_bias_kernel, (x3, w, b), [x_spec, p_spec, p_spec], 2)

    out3 = pl.pallas_call(
        kernel,
        out_shape=jax.ShapeDtypeStruct((B, C, L), x.dtype),
        grid=grid,
        in_specs=in_specs,
        out_specs=x_spec,
        compiler_params=pltpu.CompilerParams(
            dimension_semantics=("parallel", "parallel", "parallel")),
        cost_estimate=pl.CostEstimate(
            flops=n_params * B * C * L,
            transcendentals=0,
            bytes_accessed=2 * B * C * L * itemsize + n_params * C * 4),
        input_output_aliases=({0: 0} if donate_x else {}),
    )(*operands)

    return out3.reshape(B, C, H, W)


# --------------------------- pure-JAX reference -------------------------------

def reference_forward(x, weight, bias):
    C = x.shape[1]
    out = x.astype(jnp.float32) * weight.reshape(1, C, 1, 1).astype(jnp.float32)
    if bias is not None:
        out = out + bias.reshape(1, C, 1, 1).astype(jnp.float32)
    return out.astype(x.dtype)


# ------------------------------------ main ------------------------------------

if __name__ == "__main__":
    B, C, H, W = 2, 32, 16, 16          # dim=32 LayerScale, 16x16 feature map
    init_value = 1e-5

    key = jax.random.PRNGKey(0)
    k1, k2, k3 = jax.random.split(key, 3)
    x = jax.random.normal(k1, (B, C, H, W), jnp.float32)
    # module init is ones*init_value / zeros; perturb so the check is non-trivial
    weight = (init_value * jnp.ones((C, 1, 1, 1), jnp.float32)
              + 0.01 * jax.random.normal(k2, (C, 1, 1, 1), jnp.float32))
    bias = 0.01 * jax.random.normal(k3, (C,), jnp.float32)

    out = jax.block_until_ready(layer_scale(x, weight, bias))
    np.testing.assert_allclose(np.asarray(out),
                               np.asarray(reference_forward(x, weight, bias)),
                               rtol=1e-6, atol=1e-6)

    # enable_bias=False path (mul-only kernel, no zero-bias DMA)
    out_nb = jax.block_until_ready(layer_scale(x, weight, None))
    np.testing.assert_allclose(np.asarray(out_nb),
                               np.asarray(reference_forward(x, weight, None)),
                               rtol=1e-6, atol=1e-6)

    print("KERNEL_OK")
</pallas_src>

<mosaic_0001>
module attributes {stable_mosaic.version = 11 : i64} {
  func.func @_scale_bias_kernel(%arg0: i32, %arg1: i32, %arg2: i32, %arg3: memref<1x32x256xf32, #tpu.memory_space<vmem>>, %arg4: memref<32x1xf32, #tpu.memory_space<vmem>>, %arg5: memref<32x1xf32, #tpu.memory_space<vmem>>, %arg6: memref<1x32x256xf32, #tpu.memory_space<vmem>>) attributes {dimension_semantics = [#tpu.dimension_semantics<parallel>, #tpu.dimension_semantics<parallel>, #tpu.dimension_semantics<parallel>], iteration_bounds = array<i64: 2, 1, 1>, scalar_prefetch = 0 : i64, scratch_operands = 0 : i64, tpu.core_type = #tpu.core_type<tc>, window_params = [{transform_indices = @transform_0, window_bounds = array<i64: 1, 32, 256>}, {transform_indices = @transform_1, window_bounds = array<i64: 32, 1>}, {transform_indices = @transform_2, window_bounds = array<i64: 32, 1>}, {transform_indices = @transform_3, window_bounds = array<i64: 1, 32, 256>}]} {
    %c0 = arith.constant 0 : index
    %c0_0 = arith.constant 0 : index
    %c0_1 = arith.constant 0 : index
    %0 = vector.load %arg3[%c0, %c0_0, %c0_1] : memref<1x32x256xf32, #tpu.memory_space<vmem>>, vector<1x32x256xf32>
    %c0_2 = arith.constant 0 : index
    %c0_3 = arith.constant 0 : index
    %1 = vector.load %arg4[%c0_2, %c0_3] : memref<32x1xf32, #tpu.memory_space<vmem>>, vector<32x1xf32>
    %2 = vector.shape_cast %1 : vector<32x1xf32> to vector<1x32x1xf32>
    %3 = vector.broadcast %2 : vector<1x32x1xf32> to vector<1x32x256xf32>
    %4 = arith.mulf %0, %3 : vector<1x32x256xf32>
    %c0_4 = arith.constant 0 : index
    %c0_5 = arith.constant 0 : index
    %5 = vector.load %arg5[%c0_4, %c0_5] : memref<32x1xf32, #tpu.memory_space<vmem>>, vector<32x1xf32>
    %6 = vector.shape_cast %5 : vector<32x1xf32> to vector<1x32x1xf32>
    %7 = vector.broadcast %6 : vector<1x32x1xf32> to vector<1x32x256xf32>
    %8 = arith.addf %4, %7 : vector<1x32x256xf32>
    %c0_6 = arith.constant 0 : index
    %c0_7 = arith.constant 0 : index
    %c0_8 = arith.constant 0 : index
    %9 = vector.load %arg6[%c0_6, %c0_7, %c0_8] : memref<1x32x256xf32, #tpu.memory_space<vmem>>, vector<1x32x256xf32>
    tpu.vector_store %arg6[%c0_6, %c0_7, %c0_8], %8 {strides = array<i32>} : memref<1x32x256xf32, #tpu.memory_space<vmem>>, vector<1x32x256xf32>,
    return
  }
  func.func @transform_0(%arg0: i32, %arg1: i32, %arg2: i32) -> (i32, i32, i32) {
    %c0_i32 = arith.constant 0 : i32
    return %arg0, %arg1, %arg2 : i32, i32, i32
  }
  func.func @transform_1(%arg0: i32, %arg1: i32, %arg2: i32) -> (i32, i32) {
    %c0_i32 = arith.constant 0 : i32
    %c0_i32_0 = arith.constant 0 : i32
    return %arg1, %c0_i32 : i32, i32
  }
  func.func @transform_2(%arg0: i32, %arg1: i32, %arg2: i32) -> (i32, i32) {
    %c0_i32 = arith.constant 0 : i32
    %c0_i32_0 = arith.constant 0 : i32
    return %arg1, %c0_i32 : i32, i32
  }
  func.func @transform_3(%arg0: i32, %arg1: i32, %arg2: i32) -> (i32, i32, i32) {
    %c0_i32 = arith.constant 0 : i32
    return %arg0, %arg1, %arg2 : i32, i32, i32
  }
}

</mosaic_0001>

<llo_original>
// kernel: layer_scale.1
$region0: #{layer_scale.1}
  #allocation0 [shape = 'u32[]', space=smem, size = 0x4, offset = 0x4, fixed_abs, tag = 'smem constant byte address 0x4 - core index']
  #allocation1 [shape = 'u32[144,128]{1,0:T(1,128)}', space=vmem, size = 0x12000, scoped, tag = 'internal scratch']
  %s0 = inlined_call_operand.vmem [shape: f32[2,32,256], index: 0, kind: input, shape index: {}]
  %s1 = inlined_call_operand.vmem [shape: f32[32,1], index: 1, kind: input, shape index: {}]
  %s2 = inlined_call_operand.vmem [shape: f32[32,1], index: 2, kind: input, shape index: {}]
  %s3 = inlined_call_operand.vmem [shape: f32[2,32,256], index: 3, kind: output, shape index: {}]
  %s4 = sld [smem:[#allocation0]]
  $region45: #{layer_scale.1} parent=0
    _
  %s6 = ssub.s32 1, %s4
  %s7 = scalar_select 0, %s6, %s4
  loop: start=0, step=1, limit=4
  $region2: #{layer_scale.1} parent=0 // loop_pre_header
    _
  $region3: #{layer_scale.1} parent=0 // loop_header
    %s9 = sphi 0, %s13
    %p10 = scmp.ge.s32.totalorder %s9, 4
    %s16 = sphi 0, %s35
    %s17 = sphi 0, %s31
    %s18 = sphi 0, %s27
    %s19 = sphi 0, %s16
    %s20 = sphi 0, %s17
    %s21 = sphi 0, %s18
    %s22 = sphi 0, %s19
    %s23 = sphi 0, %s20
    %s24 = sphi 0, %s21
    %s42 = sphi 0, %s44
    %s45 = sphi 0, %s42
    %s46 = sphi 0, %s45
    %s62 = sphi 0, %s46
    %s68 = sphi 0, %s70
    %s71 = sphi 0, %s68
    %s72 = sphi 0, %s71
    %s88 = sphi 0, %s72
    %s94 = sphi 0, %s96
    %s97 = sphi 0, %s94
    %s98 = sphi 0, %s97
    %s114 = sphi 0, %s98
    %s124 = sphi 0, %s126
    %s127 = sphi 0, %s124
    %s128 = sphi 0, %s127
    %s144 = sphi 0, %s128
  $region4: #{layer_scale.1} parent=0 // loop_header_branch
    %12 = sbr.rel (%p10) target = $region8
  $region5: #{layer_scale.1} parent=0 // loop_body
    %s14 = ssub.s32 %s9, 1
    %s15 = ssub.s32 %s9, 2
    %s25 = sadd.s32 1, %s18
    %p26 = scmp.ge.s32.totalorder %s25, 1
    %s27 = scalar_select %p26, 0, %s25
    %s28 = sadd.s32 1, %s17
    %s29 = scalar_select %p26, %s28, %s17
    %p30 = scmp.ge.s32.totalorder %s29, 1
    %s31 = scalar_select %p30, 0, %s29
    %s32 = sadd.s32 1, %s16
    %s33 = scalar_select %p30, %s32, %s16
    %p34 = scmp.ge.s32.totalorder %s33, 2
    %s35 = scalar_select %p34, 0, %s33
    %s36 = ssub.s32 %s16, %s35
    %s37 = ssub.s32 %s17, %s31
    %s38 = sor.u32 %s36, %s37
    %s39 = ssub.s32 %s18, %s27
    %s40 = sor.u32 %s38, %s39
    %p41 = scmp.eq.s32.totalorder %s40, 0
    %s43 = sadd.s32 %s42, 1
    %s44 = scalar_select %p41, %s42, %s43
    %p47 = pneg %p41
    %p48 = scmp.eq.s32.totalorder %s9, 1
    %p49 = por %p47, %p48
    %p50 = scmp.ne.s32.totalorder %s42, %s45
    %p51 = scmp.eq.s32.totalorder %s9, 0
    %p52 = por %p50, %p51
    %p53 = scmp.ne.s32.totalorder %s42, %s45
    %p54 = scmp.eq.s32.totalorder %s14, 1
    %p55 = por %p53, %p54
    %p56 = scmp.ne.s32.totalorder %s45, %s46
    %p57 = scmp.eq.s32.totalorder %s14, 0
    %p58 = por %p56, %p57
    %p59 = scmp.ne.s32.totalorder %s45, %s46
    %p60 = scmp.eq.s32.totalorder %s15, 1
    %p61 = por %p59, %p60
    %p63 = scmp.ne.s32.totalorder %s46, %s62
    %p64 = scmp.eq.s32.totalorder %s15, 0
    %p65 = por %p63, %p64
    %s66 = ssub.s32 %s17, %s31
    %p67 = scmp.eq.s32.totalorder %s66, 0
    %s69 = sadd.s32 %s68, 1
    %s70 = scalar_select %p67, %s68, %s69
    %p73 = pneg %p67
    %p74 = scmp.eq.s32.totalorder %s9, 1
    %p75 = por %p73, %p74
    %p76 = scmp.ne.s32.totalorder %s68, %s71
    %p77 = scmp.eq.s32.totalorder %s9, 0
    %p78 = por %p76, %p77
    %p79 = scmp.ne.s32.totalorder %s68, %s71
    %p80 = scmp.eq.s32.totalorder %s14, 1
    %p81 = por %p79, %p80
    %p82 = scmp.ne.s32.totalorder %s71, %s72
    %p83 = scmp.eq.s32.totalorder %s14, 0
    %p84 = por %p82, %p83
    %p85 = scmp.ne.s32.totalorder %s71, %s72
    %p86 = scmp.eq.s32.totalorder %s15, 1
    %p87 = por %p85, %p86
    %p89 = scmp.ne.s32.totalorder %s72, %s88
    %p90 = scmp.eq.s32.totalorder %s15, 0
    %p91 = por %p89, %p90
    %s92 = ssub.s32 %s17, %s31
    %p93 = scmp.eq.s32.totalorder %s92, 0
    %s95 = sadd.s32 %s94, 1
    %s96 = scalar_select %p93, %s94, %s95
    %p99 = pneg %p93
    %p100 = scmp.eq.s32.totalorder %s9, 1
    %p101 = por %p99, %p100
    %p102 = scmp.ne.s32.totalorder %s94, %s97
    %p103 = scmp.eq.s32.totalorder %s9, 0
    %p104 = por %p102, %p103
    %p105 = scmp.ne.s32.totalorder %s94, %s97
    %p106 = scmp.eq.s32.totalorder %s14, 1
    %p107 = por %p105, %p106
    %p108 = scmp.ne.s32.totalorder %s97, %s98
    %p109 = scmp.eq.s32.totalorder %s14, 0
    %p110 = por %p108, %p109
    %p111 = scmp.ne.s32.totalorder %s97, %s98
    %p112 = scmp.eq.s32.totalorder %s15, 1
    %p113 = por %p111, %p112
    %p115 = scmp.ne.s32.totalorder %s98, %s114
    %p116 = scmp.eq.s32.totalorder %s15, 0
    %p117 = por %p115, %p116
    %s118 = ssub.s32 %s16, %s35
    %s119 = ssub.s32 %s17, %s31
    %s120 = sor.u32 %s118, %s119
    %s121 = ssub.s32 %s18, %s27
    %s122 = sor.u32 %s120, %s121
    %p123 = scmp.eq.s32.totalorder %s122, 0
    %s125 = sadd.s32 %s124, 1
    %s126 = scalar_select %p123, %s124, %s125
    %p129 = pneg %p123
    %p130 = scmp.eq.s32.totalorder %s9, 1
    %p131 = por %p129, %p130
    %p132 = scmp.ne.s32.totalorder %s124, %s127
    %p133 = scmp.eq.s32.totalorder %s9, 0
    %p134 = por %p132, %p133
    %p135 = scmp.ne.s32.totalorder %s124, %s127
    %p136 = scmp.eq.s32.totalorder %s14, 1
    %p137 = por %p135, %p136
    %p138 = scmp.ne.s32.totalorder %s127, %s128
    %p139 = scmp.eq.s32.totalorder %s14, 0
    %p140 = por %p138, %p139
    %p141 = scmp.ne.s32.totalorder %s127, %s128
    %p142 = scmp.eq.s32.totalorder %s15, 1
    %p143 = por %p141, %p142
    %p145 = scmp.ne.s32.totalorder %s128, %s144
    %p146 = scmp.eq.s32.totalorder %s15, 0
    %p147 = por %p145, %p146
    %p148 = scmp.le.s32.totalorder 1, %s9
    %p149 = scmp.lt.s32.totalorder %s9, 3
    %p150 = pnand %p148, %p149
    %p151 = pneg %p150
    // Predicated region
    $region9: #{layer_scale.1} parent=5 // pred_check
      _
    $region10: #{layer_scale.1} parent=5 // pred_check_branch
      %153 = sbr.rel (%p150) target = $region12
    $region11: #{layer_scale.1} parent=5 // pred_region
      %s154 = ssub.s32 %s9, 1
      // Predicated region
      $region13: #{layer_scale.1} parent=11 // pred_check
        %p155 = pneg %p84
      $region14: #{layer_scale.1} parent=11 // pred_check_branch
        %157 = sbr.rel (%p155) target = $region16
      $region15: #{layer_scale.1} parent=11 // pred_region
        %s158 = smul.u32 4, %s20
        %p159 = scmp.lt.s32.totalorder %s158, 3
        %s160 = scalar_select %p159, %s158, 3
        %s161 = smul.addr %s160, 8
        %s162 = scalar_lea.vmem %s1, %s161
        %s163 = smul.u32 4, %s20
      $region16: #{layer_scale.1} parent=11 // pred_fallthru
        _
      // Predicated region
      $region17: #{layer_scale.1} parent=11 // pred_check
        %p164 = pneg %p110
      $region18: #{layer_scale.1} parent=11 // pred_check_branch
        %166 = sbr.rel (%p164) target = $region20
      $region19: #{layer_scale.1} parent=11 // pred_region
        %s167 = smul.u32 4, %s20
        %p168 = scmp.lt.s32.totalorder %s167, 3
        %s169 = scalar_select %p168, %s167, 3
        %s170 = smul.addr %s169, 8
        %s171 = scalar_lea.vmem %s2, %s170
        %s172 = smul.u32 4, %s20
      $region20: #{layer_scale.1} parent=11 // pred_fallthru
        _
    $region12: #{layer_scale.1} parent=5 // pred_fallthru
      _
    %p173 = scmp.lt.s32.totalorder %s9, 2
    // Predicated region
    $region21: #{layer_scale.1} parent=5 // pred_check
      %p174 = pneg %p173
    $region22: #{layer_scale.1} parent=5 // pred_check_branch
      %176 = sbr.rel (%p174) target = $region24
    $region23: #{layer_scale.1} parent=5 // pred_region
      // Predicated region
      $region25: #{layer_scale.1} parent=23 // pred_check
        %p177 = pneg %p52
      $region26: #{layer_scale.1} parent=23 // pred_check_branch
        %179 = sbr.rel (%p177) target = $region28
      $region27: #{layer_scale.1} parent=23 // pred_region
        %s180 = smul.u32 4, %s17
        %s181 = smul.u32 2, %s18
        %p182 = scmp.lt.s32.totalorder %s16, 1
        %s183 = scalar_select %p182, %s16, 1
        %p184 = scmp.lt.s32.totalorder %s180, 3
        %s185 = scalar_select %p184, %s180, 3
        %p186 = scmp.lt.s32.totalorder %s181, 1
        %s187 = scalar_select %p186, %s181, 1
        %s188 = smul.addr %s185, 2
        %s189 = sadd.s32 %s187, %s188
        %s190 = smul.addr %s183, 8
        %s191 = sadd.s32 %s189, %s190
        %s192 = smul.addr %s191, 8
        %s193 = scalar_lea.vmem %s0, %s192
        %s194 = smul.u32 4, %s17
        %s195 = smul.u32 2, %s18
      $region28: #{layer_scale.1} parent=23 // pred_fallthru
        _
    $region24: #{layer_scale.1} parent=5 // pred_fallthru
      _
    %p196 = scmp.le.s32.totalorder 1, %s9
    %p197 = scmp.lt.s32.totalorder %s9, 3
    %p198 = pnand %p196, %p197
    %p199 = pneg %p198
    // Predicated region
    $region29: #{layer_scale.1} parent=5 // pred_check
      _
    $region30: #{layer_scale.1} parent=5 // pred_check_branch
      %201 = sbr.rel (%p198) target = $region32
    $region31: #{layer_scale.1} parent=5 // pred_region
      %s202 = ssub.s32 %s9, 1
      %s203 = smul.u32 4, %s20
      %s204 = smul.u32 2, %s21
      %p205 = scmp.lt.s32.totalorder %s19, 1
      %s206 = scalar_select %p205, %s19, 1
      %p207 = scmp.lt.s32.totalorder %s203, 3
      %s208 = scalar_select %p207, %s203, 3
      %p209 = scmp.lt.s32.totalorder %s204, 1
      %s210 = scalar_select %p209, %s204, 1
      %s211 = smul.addr %s208, 2
      %s212 = sadd.s32 %s210, %s211
      %s213 = smul.addr %s206, 8
      %s214 = sadd.s32 %s212, %s213
      %s215 = smul.addr %s214, 8
      %s216 = scalar_lea.vmem %s0, %s215
      %p217 = pneg %p58
      %p218 = pneg %p55
      %s219 = smul.u32 4, %s20
      %p220 = scmp.lt.s32.totalorder %s219, 3
      %s221 = scalar_select %p220, %s219, 3
      %s222 = smul.addr %s221, 8
      %s223 = scalar_lea.vmem %s1, %s222
      %p224 = pneg %p84
      %p225 = pneg %p81
      %s226 = smul.u32 4, %s20
      %p227 = scmp.lt.s32.totalorder %s226, 3
      %s228 = scalar_select %p227, %s226, 3
      %s229 = smul.addr %s228, 8
      %s230 = scalar_lea.vmem %s2, %s229
      %p231 = pneg %p110
      %p232 = pneg %p107
      %p233 = pneg %p140
      %p234 = pneg %p137
      %s235 = smul.u32 4, %s20
      %s236 = smul.u32 2, %s21
      %p237 = scmp.lt.s32.totalorder %s19, 1
      %s238 = scalar_select %p237, %s19, 1
      %p239 = scmp.lt.s32.totalorder %s235, 3
      %s240 = scalar_select %p239, %s235, 3
      %p241 = scmp.lt.s32.totalorder %s236, 1
      %s242 = scalar_select %p241, %s236, 1
      %s243 = smul.addr %s240, 2
      %s244 = sadd.s32 %s242, %s243
      %s245 = smul.addr %s238, 8
      %s246 = sadd.s32 %s244, %s245
      %s247 = smul.addr %s246, 8
      %s248 = scalar_lea.vmem %s3, %s247
      %s249 = smul.u32 4, %s20
      %s250 = smul.u32 2, %s21
      %p251 = scmp.lt.s32.totalorder %s19, 1
      %s252 = scalar_select %p251, %s19, 1
      %p253 = scmp.lt.s32.totalorder %s249, 3
      %s254 = scalar_select %p253, %s249, 3
      %p255 = scmp.lt.s32.totalorder %s250, 1
      %s256 = scalar_select %p255, %s250, 1
      %s257 = smul.addr %s254, 2
      %s258 = sadd.s32 %s256, %s257
      %s259 = smul.addr %s252, 8
      %s260 = sadd.s32 %s258, %s259
      %s261 = smul.addr %s260, 8
      %s262 = scalar_lea.vmem %s0, %s261
      %s263 = smul.u32 4, %s20
      %s264 = smul.u32 2, %s21
      %s265 = smul.u32 4, %s20
      %p266 = scmp.lt.s32.totalorder %s265, 3
      %s267 = scalar_select %p266, %s265, 3
      %s268 = smul.addr %s267, 8
      %s269 = scalar_lea.vmem %s1, %s268
      %s270 = smul.u32 4, %s20
      %s271 = smul.u32 4, %s20
      %p272 = scmp.lt.s32.totalorder %s271, 3
      %s273 = scalar_select %p272, %s271, 3
      %s274 = smul.addr %s273, 8
      %s275 = scalar_lea.vmem %s2, %s274
      %s276 = smul.u32 4, %s20
      %s277 = smul.u32 4, %s20
      %s278 = smul.u32 2, %s21
      %p279 = scmp.lt.s32.totalorder %s19, 1
      %s280 = scalar_select %p279, %s19, 1
      %p281 = scmp.lt.s32.totalorder %s277, 3
      %s282 = scalar_select %p281, %s277, 3
      %p283 = scmp.lt.s32.totalorder %s278, 1
      %s284 = scalar_select %p283, %s278, 1
      %s285 = smul.addr %s282, 2
      %s286 = sadd.s32 %s284, %s285
      %s287 = smul.addr %s280, 8
      %s288 = sadd.s32 %s286, %s287
      %s289 = smul.addr %s288, 8
      %s290 = scalar_lea.vmem %s3, %s289
      %s291 = smul.u32 4, %s20
      %s292 = smul.u32 2, %s21
      %v293 = vld [vmem:[%s262] sm:$0xff]
      %v294 = vld [vmem:[%s262 + $0x8] sm:$0xff]
      %v295 = vld [vmem:[%s262 + $0x10] sm:$0xff]
      %v296 = vld [vmem:[%s262 + $0x18] sm:$0xff]
      %v297 = vld [vmem:[%s262 + $0x20] sm:$0xff]
      %v298 = vld [vmem:[%s262 + $0x28] sm:$0xff]
      %v299 = vld [vmem:[%s262 + $0x30] sm:$0xff]
      %v300 = vld [vmem:[%s262 + $0x38] sm:$0xff]
      %v301 = vld [vmem:[%s269] sm:$0xff]
      %v302 = vld [vmem:[%s269 + $0x8] sm:$0xff]
      %v303 = vld [vmem:[%s269 + $0x10] sm:$0xff]
      %v304 = vld [vmem:[%s269 + $0x18] sm:$0xff]
      %306 = vset.pattern.permute.xlu0 0
      %307 = vperm.xlu0 %306, %v301
      %v308 = vpop.permute.xlu0 %307
      %311 = vset.pattern.permute.xlu0 0
      %312 = vperm.xlu0 %311, %v302
      %v313 = vpop.permute.xlu0 %312
      %316 = vset.pattern.permute.xlu0 0
      %317 = vperm.xlu0 %316, %v303
      %v318 = vpop.permute.xlu0 %317
      %321 = vset.pattern.permute.xlu0 0
      %322 = vperm.xlu0 %321, %v304
      %v323 = vpop.permute.xlu0 %322
      %v325 = vmul.f32 %v293, %v308
      %v326 = vmul.f32 %v294, %v308
      %v327 = vmul.f32 %v295, %v313
      %v328 = vmul.f32 %v296, %v313
      %v329 = vmul.f32 %v297, %v318
      %v330 = vmul.f32 %v298, %v318
      %v331 = vmul.f32 %v299, %v323
      %v332 = vmul.f32 %v300, %v323
      %v333 = vld [vmem:[%s275] sm:$0xff]
      %v334 = vld [vmem:[%s275 + $0x8] sm:$0xff]
      %v335 = vld [vmem:[%s275 + $0x10] sm:$0xff]
      %v336 = vld [vmem:[%s275 + $0x18] sm:$0xff]
      %338 = vset.pattern.permute.xlu0 0
      %339 = vperm.xlu0 %338, %v333
      %v340 = vpop.permute.xlu0 %339
      %343 = vset.pattern.permute.xlu0 0
      %344 = vperm.xlu0 %343, %v334
      %v345 = vpop.permute.xlu0 %344
      %348 = vset.pattern.permute.xlu0 0
      %349 = vperm.xlu0 %348, %v335
      %v350 = vpop.permute.xlu0 %349
      %353 = vset.pattern.permute.xlu0 0
      %354 = vperm.xlu0 %353, %v336
      %v355 = vpop.permute.xlu0 %354
      %v357 = vadd.f32 %v325, %v340
      %v358 = vadd.f32 %v326, %v340
      %v359 = vadd.f32 %v327, %v345
      %v360 = vadd.f32 %v328, %v345
      %v361 = vadd.f32 %v329, %v350
      %v362 = vadd.f32 %v330, %v350
      %v363 = vadd.f32 %v331, %v355
      %v364 = vadd.f32 %v332, %v355
      %365 = vst [vmem:[%s290] sm:$0xff] %v357
      %366 = vst [vmem:[%s290 + $0x8] sm:$0xff] %v358
      %367 = vst [vmem:[%s290 + $0x10] sm:$0xff] %v359
      %368 = vst [vmem:[%s290 + $0x18] sm:$0xff] %v360
      %369 = vst [vmem:[%s290 + $0x20] sm:$0xff] %v361
      %370 = vst [vmem:[%s290 + $0x28] sm:$0xff] %v362
      %371 = vst [vmem:[%s290 + $0x30] sm:$0xff] %v363
      %372 = vst [vmem:[%s290 + $0x38] sm:$0xff] %v364
      %s373 = smul.u32 4, %s20
      %s374 = smul.u32 2, %s21
      %p375 = scmp.lt.s32.totalorder %s19, 1
      %s376 = scalar_select %p375, %s19, 1
      %p377 = scmp.lt.s32.totalorder %s373, 3
      %s378 = scalar_select %p377, %s373, 3
      %p379 = scmp.lt.s32.totalorder %s374, 1
      %s380 = scalar_select %p379, %s374, 1
      %s381 = smul.addr %s378, 2
      %s382 = sadd.s32 %s380, %s381
      %s383 = smul.addr %s376, 8
      %s384 = sadd.s32 %s382, %s383
      %s385 = smul.addr %s384, 8
      %s386 = scalar_lea.vmem %s3, %s385
      // Predicated region
      $region33: #{layer_scale.1} parent=31 // pred_check
        %p387 = pneg %p137
      $region34: #{layer_scale.1} parent=31 // pred_check_branch
        %389 = sbr.rel (%p387) target = $region36
      $region35: #{layer_scale.1} parent=31 // pred_region
        %s390 = smul.u32 4, %s20
        %s391 = smul.u32 2, %s21
      $region36: #{layer_scale.1} parent=31 // pred_fallthru
        _
    $region32: #{layer_scale.1} parent=5 // pred_fallthru
      _
    %p392 = scmp.le.s32.totalorder 2, %s9
    // Predicated region
    $region37: #{layer_scale.1} parent=5 // pred_check
      %p393 = pneg %p392
    $region38: #{layer_scale.1} parent=5 // pred_check_branch
      %395 = sbr.rel (%p393) target = $region40
    $region39: #{layer_scale.1} parent=5 // pred_region
      %s396 = ssub.s32 %s9, 2
      // Predicated region
      $region41: #{layer_scale.1} parent=39 // pred_check
        %p397 = pneg %p143
      $region42: #{layer_scale.1} parent=39 // pred_check_branch
        %399 = sbr.rel (%p397) target = $region44
      $region43: #{layer_scale.1} parent=39 // pred_region
        %s400 = smul.u32 4, %s23
        %s401 = smul.u32 2, %s24
        %p402 = scmp.lt.s32.totalorder %s22, 1
        %s403 = scalar_select %p402, %s22, 1
        %p404 = scmp.lt.s32.totalorder %s400, 3
        %s405 = scalar_select %p404, %s400, 3
        %p406 = scmp.lt.s32.totalorder %s401, 1
        %s407 = scalar_select %p406, %s401, 1
        %s408 = smul.addr %s405, 2
        %s409 = sadd.s32 %s407, %s408
        %s410 = smul.addr %s403, 8
        %s411 = sadd.s32 %s409, %s410
        %s412 = smul.addr %s411, 8
        %s413 = scalar_lea.vmem %s3, %s412
      $region44: #{layer_scale.1} parent=39 // pred_fallthru
        _
    $region40: #{layer_scale.1} parent=5 // pred_fallthru
      _
  $region6: #{layer_scale.1} parent=0 // loop_footer
    %s13 = sadd.s32 1, %s9
  $region7: #{layer_scale.1} parent=0 // loop_footer_branch
    %8 = sbr.rel target = $region3
  $region8: #{layer_scale.1} parent=0 // loop_exit
    _

</llo_original>
